<compile_context>
chip_gen: v7x
topology: tpu7x:2x2x1
jax: 0.10.0
libtpu: 0.0.40
codegen_flags: <defaults>
</compile_context>

<pallas_src>
import functools

import jax
import jax.numpy as jnp
from jax.experimental import pallas as pl
from jax.experimental.pallas import tpu as pltpu


def _round_up(x, m):
    return ((x + m - 1) // m) * m


# ---------------------------------------------------------------------------
# Pallas kernel:  relu(X @ W + b)  ->  patch feats + corrected spatial mean
# ---------------------------------------------------------------------------
def _extractor_kernel(x_ref, w_ref, b_ref, pf_ref, avg_ref, *, hw_valid):
    # x_ref : (Bblk, HWp, Kp)   bf16 im2col patches (padded, lane-aligned)
    # w_ref : (Kp, Fp)          bf16 conv weight (im2col layout, padded)
    # b_ref : (1, Fp)           f32 conv bias (padded)
    # pf_ref: (Bblk, HWp, Fp)   f32 patch features (padded; wrapper strips)
    # avg_ref:(Bblk, 1, Fp)     f32 avg-pooled features (padded)
    bblk, hw_pad, k_pad = x_ref.shape
    f_pad = w_ref.shape[1]

    # Flatten batch block into the M dim: one large aligned MXU matmul.
    # (hw_pad is a multiple of 8 and k_pad of 128, so this reshape does not
    # cross (8,128) tile boundaries.)
    x = x_ref[...].reshape(bblk * hw_pad, k_pad)             # bf16
    w = w_ref[...]                                           # bf16

    y = jnp.dot(x, w, preferred_element_type=jnp.float32)    # f32 accumulate
    bias = b_ref[...]                                        # (1, Fp) f32
    y = jnp.maximum(y + bias, 0.0)                           # bias + ReLU

    y3 = y.reshape(bblk, hw_pad, f_pad)
    pf_ref[...] = y3.astype(pf_ref.dtype)                    # lane-dense store

    # Global 7x7 average pool == mean over the hw_valid real spatial rows.
    # Padded rows have x == 0, so each contributes exactly relu(bias) to the
    # sum; subtract that constant instead of building a full iota/where mask.
    total = jnp.sum(y3, axis=1, keepdims=True)               # (Bblk, 1, Fp)
    pad_rows = float(hw_pad - hw_valid)
    correction = pad_rows * jnp.maximum(bias, 0.0)            # (1, Fp)
    avg = (total - correction[None]) * (1.0 / hw_valid)
    avg_ref[...] = avg.astype(avg_ref.dtype)


# ---------------------------------------------------------------------------
# im2col (plain JAX glue)
# ---------------------------------------------------------------------------
def _im2col(images, kh=3, kw=3, stride=2, pad=1):
    """images: [B, Cin, H, W] -> patches [B, OH*OW, Cin*kh*kw]."""
    b, cin, h, w = images.shape
    oh = (h + 2 * pad - kh) // stride + 1
    ow = (w + 2 * pad - kw) // stride + 1
    xp = jnp.pad(images, ((0, 0), (0, 0), (pad, pad), (pad, pad)))
    cols = []
    for i in range(kh):
        for j in range(kw):
            cols.append(xp[:, :, i:i + stride * oh:stride, j:j + stride * ow:stride])
    patches = jnp.stack(cols, axis=0)                         # [kh*kw,B,Cin,OH,OW]
    patches = jnp.transpose(patches, (1, 3, 4, 2, 0))         # [B,OH,OW,Cin,kh*kw]
    patches = patches.reshape(b, oh * ow, cin * kh * kw)
    return patches, oh, ow


# ---------------------------------------------------------------------------
# Wrapper
# ---------------------------------------------------------------------------
def visual_extractor_forward(images, conv_w, conv_b, *, batch_block=None):
    """images: [B, Cin, H, W]; conv_w: [F, Cin, 3, 3]; conv_b: [F].

    Returns (patch_feats [B, OH*OW, F], avg_feats [B, F]) matching the PyTorch
    VisualExtractor.forward semantics for a 7x7 backbone feature map.
    """
    b, cin, _, _ = images.shape
    f = conv_w.shape[0]

    x, oh, ow = _im2col(images)                               # [B, HW, Cin*9] f32
    hw = oh * ow
    cinkk = cin * 9

    # Padded, lane/sublane-aligned sizes.
    hw_pad = _round_up(hw, 8)                                 # 49 -> 56
    k_pad = _round_up(cinkk, 128)                             # 36 -> 128
    f_pad = _round_up(f, 128)                                 # 32 -> 128

    # Batch block: cap for VMEM headroom (v7x has 64 MiB), keep >= 2 parallel
    # grid tiles whenever B >= 2 so both v7x TensorCores get work.
    if batch_block is None:
        batch_block = max(1, min(32, pl.cdiv(b, 2)))
    b_pad = _round_up(b, batch_block)
    n_blocks = b_pad // batch_block

    # Pad + cast operands.  bf16 inputs feed the MXU at full rate; zero pad is
    # numerically free for the matmul.
    x_p = jnp.pad(x, ((0, b_pad - b), (0, hw_pad - hw), (0, k_pad - cinkk)))
    x_p = x_p.astype(jnp.bfloat16)
    w2 = conv_w.reshape(f, cinkk).T                           # [Cin*9, F]
    w_p = jnp.pad(w2, ((0, k_pad - cinkk), (0, f_pad - f))).astype(jnp.bfloat16)
    b_p = jnp.pad(conv_b, (0, f_pad - f)).astype(jnp.float32).reshape(1, f_pad)

    kernel = functools.partial(_extractor_kernel, hw_valid=hw)

    grid_spec = pltpu.PrefetchScalarGridSpec(
        num_scalar_prefetch=0,
        grid=(n_blocks,),
        in_specs=[
            pl.BlockSpec((batch_block, hw_pad, k_pad), lambda i: (i, 0, 0)),
            pl.BlockSpec((k_pad, f_pad), lambda i: (0, 0)),    # weight: resident
            pl.BlockSpec((1, f_pad), lambda i: (0, 0)),        # bias: resident
        ],
        out_specs=[
            pl.BlockSpec((batch_block, hw_pad, f_pad), lambda i: (i, 0, 0)),
            pl.BlockSpec((batch_block, 1, f_pad), lambda i: (i, 0, 0)),
        ],
    )

    pf_p, avg_p = pl.pallas_call(
        kernel,
        out_shape=(
            jax.ShapeDtypeStruct((b_pad, hw_pad, f_pad), jnp.float32),
            jax.ShapeDtypeStruct((b_pad, 1, f_pad), jnp.float32),
        ),
        grid_spec=grid_spec,
        compiler_params=pltpu.CompilerParams(
            dimension_semantics=("parallel",),
        ),
    )(x_p, w_p, b_p)

    # Strip padding; `.squeeze().reshape(-1, feat_size)` in the PyTorch code.
    patch_feats = pf_p[:b, :hw, :f]
    avg_feats = avg_p[:b, 0, :f]
    return patch_feats, avg_feats


# ---------------------------------------------------------------------------
# Pure-JAX reference (uses the same bf16-quantized operands, f32 math)
# ---------------------------------------------------------------------------
def _reference(images, conv_w, conv_b):
    x, _, _ = _im2col(images)
    f = conv_w.shape[0]
    w2 = conv_w.reshape(f, -1).T
    xq = x.astype(jnp.bfloat16).astype(jnp.float32)
    wq = w2.astype(jnp.bfloat16).astype(jnp.float32)
    y = jnp.einsum("bpc,cf->bpf", xq, wq) + conv_b[None, None, :]
    y = jnp.maximum(y, 0.0)
    patch_feats = y                                           # [B, HW, F]
    avg_feats = jnp.mean(y, axis=1)                           # AvgPool2d(7) on 7x7
    return patch_feats, avg_feats


if __name__ == "__main__":
    key = jax.random.PRNGKey(0)
    k_img, k_w, k_b = jax.random.split(key, 3)

    # Small shapes: batch=2, in-channels=4, spatial 14x14 -> 7x7 feature map,
    # feature size 32 (consistent with the 7x7 AvgPool in the module).
    B, CIN, H, W = 2, 4, 14, 14
    F = 32

    images = jax.random.normal(k_img, (B, CIN, H, W), dtype=jnp.float32)
    conv_w = jax.random.normal(k_w, (F, CIN, 3, 3), dtype=jnp.float32) * 0.1
    conv_b = jax.random.normal(k_b, (F,), dtype=jnp.float32) * 0.01

    patch_feats, avg_feats = visual_extractor_forward(images, conv_w, conv_b)
    jax.block_until_ready((patch_feats, avg_feats))

    ref_patch, ref_avg = _reference(images, conv_w, conv_b)
    assert patch_feats.shape == (B, 49, F), patch_feats.shape
    assert avg_feats.shape == (B, F), avg_feats.shape
    assert jnp.allclose(patch_feats, ref_patch, atol=1e-2, rtol=1e-2)
    assert jnp.allclose(avg_feats, ref_avg, atol=1e-2, rtol=1e-2)

    print("KERNEL_OK")
</pallas_src>

<mosaic_0001>
module attributes {stable_mosaic.version = 11 : i64} {
  func.func @_extractor_kernel(%arg0: i32, %arg1: memref<1x56x128xbf16, #tpu.memory_space<vmem>>, %arg2: memref<128x128xbf16, #tpu.memory_space<vmem>>, %arg3: memref<1x128xf32, #tpu.memory_space<vmem>>, %arg4: memref<1x56x128xf32, #tpu.memory_space<vmem>>, %arg5: memref<1x1x128xf32, #tpu.memory_space<vmem>>) attributes {dimension_semantics = [#tpu.dimension_semantics<parallel>], iteration_bounds = array<i64: 2>, scalar_prefetch = 0 : i64, scratch_operands = 0 : i64, tpu.core_type = #tpu.core_type<tc>, window_params = [{transform_indices = @transform_0, window_bounds = array<i64: 1, 56, 128>}, {pipeline_mode = #tpu.pipeline_mode<synchronous>, transform_indices = @transform_1, window_bounds = array<i64: 128, 128>}, {pipeline_mode = #tpu.pipeline_mode<synchronous>, transform_indices = @transform_2, window_bounds = array<i64: 1, 128>}, {transform_indices = @transform_3, window_bounds = array<i64: 1, 56, 128>}, {transform_indices = @transform_4, window_bounds = array<i64: 1, 1, 128>}]} {
    %c0 = arith.constant 0 : index
    %c0_0 = arith.constant 0 : index
    %c0_1 = arith.constant 0 : index
    %0 = vector.load %arg1[%c0, %c0_0, %c0_1] : memref<1x56x128xbf16, #tpu.memory_space<vmem>>, vector<1x56x128xbf16>
    %1 = vector.shape_cast %0 : vector<1x56x128xbf16> to vector<56x128xbf16>
    %c0_2 = arith.constant 0 : index
    %c0_3 = arith.constant 0 : index
    %2 = vector.load %arg2[%c0_2, %c0_3] : memref<128x128xbf16, #tpu.memory_space<vmem>>, vector<128x128xbf16>
    %cst = arith.constant dense<0.000000e+00> : vector<56x128xf32>
    %3 = tpu.matmul %1, %2, %cst {dimension_numbers = #tpu.dot_dimension_numbers<[1], [0], [0], [1], [0, 0, 1, 1], [], []>} : vector<56x128xbf16>, vector<128x128xbf16>, vector<56x128xf32> -> vector<56x128xf32>
    %c0_4 = arith.constant 0 : index
    %c0_5 = arith.constant 0 : index
    %4 = vector.load %arg3[%c0_4, %c0_5] : memref<1x128xf32, #tpu.memory_space<vmem>>, vector<1x128xf32>
    %5 = vector.broadcast %4 : vector<1x128xf32> to vector<56x128xf32>
    %6 = arith.addf %3, %5 : vector<56x128xf32>
    %cst_6 = arith.constant 0.000000e+00 : f32
    %7 = vector.broadcast %cst_6 : f32 to vector<56x128xf32>
    %8 = arith.maximumf %6, %7 : vector<56x128xf32>
    %9 = vector.shape_cast %8 : vector<56x128xf32> to vector<1x56x128xf32>
    %c0_7 = arith.constant 0 : index
    %c0_8 = arith.constant 0 : index
    %c0_9 = arith.constant 0 : index
    %10 = vector.load %arg4[%c0_7, %c0_8, %c0_9] : memref<1x56x128xf32, #tpu.memory_space<vmem>>, vector<1x56x128xf32>
    tpu.vector_store %arg4[%c0_7, %c0_8, %c0_9], %9 {strides = array<i32>} : memref<1x56x128xf32, #tpu.memory_space<vmem>>, vector<1x56x128xf32>,
    %cst_10 = arith.constant dense<0.000000e+00> : vector<1x128xf32>
    %11 = vector.multi_reduction <add>, %9, %cst_10 [1] : vector<1x56x128xf32> to vector<1x128xf32>
    %12 = vector.shape_cast %11 : vector<1x128xf32> to vector<1x1x128xf32>
    %cst_11 = arith.constant 0.000000e+00 : f32
    %13 = vector.broadcast %cst_11 : f32 to vector<1x128xf32>
    %14 = arith.maximumf %4, %13 : vector<1x128xf32>
    %cst_12 = arith.constant 7.000000e+00 : f32
    %15 = vector.broadcast %cst_12 : f32 to vector<1x128xf32>
    %16 = arith.mulf %15, %14 : vector<1x128xf32>
    %17 = vector.shape_cast %16 : vector<1x128xf32> to vector<1x1x128xf32>
    %18 = arith.subf %12, %17 : vector<1x1x128xf32>
    %cst_13 = arith.constant 0.0204081628 : f32
    %19 = vector.broadcast %cst_13 : f32 to vector<1x1x128xf32>
    %20 = arith.mulf %18, %19 : vector<1x1x128xf32>
    %c0_14 = arith.constant 0 : index
    %c0_15 = arith.constant 0 : index
    %c0_16 = arith.constant 0 : index
    %21 = vector.load %arg5[%c0_14, %c0_15, %c0_16] : memref<1x1x128xf32, #tpu.memory_space<vmem>>, vector<1x1x128xf32>
    tpu.vector_store %arg5[%c0_14, %c0_15, %c0_16], %20 {strides = array<i32>} : memref<1x1x128xf32, #tpu.memory_space<vmem>>, vector<1x1x128xf32>,
    return
  }
  func.func @transform_0(%arg0: i32) -> (i32, i32, i32) {
    %c0_i32 = arith.constant 0 : i32
    %c0_i32_0 = arith.constant 0 : i32
    %c0_i32_1 = arith.constant 0 : i32
    return %arg0, %c0_i32, %c0_i32_0 : i32, i32, i32
  }
  func.func @transform_1(%arg0: i32) -> (i32, i32) {
    %c0_i32 = arith.constant 0 : i32
    %c0_i32_0 = arith.constant 0 : i32
    %c0_i32_1 = arith.constant 0 : i32
    return %c0_i32, %c0_i32_0 : i32, i32
  }
  func.func @transform_2(%arg0: i32) -> (i32, i32) {
    %c0_i32 = arith.constant 0 : i32
    %c0_i32_0 = arith.constant 0 : i32
    %c0_i32_1 = arith.constant 0 : i32
    return %c0_i32, %c0_i32_0 : i32, i32
  }
  func.func @transform_3(%arg0: i32) -> (i32, i32, i32) {
    %c0_i32 = arith.constant 0 : i32
    %c0_i32_0 = arith.constant 0 : i32
    %c0_i32_1 = arith.constant 0 : i32
    return %arg0, %c0_i32, %c0_i32_0 : i32, i32, i32
  }
  func.func @transform_4(%arg0: i32) -> (i32, i32, i32) {
    %c0_i32 = arith.constant 0 : i32
    %c0_i32_0 = arith.constant 0 : i32
    %c0_i32_1 = arith.constant 0 : i32
    return %arg0, %c0_i32, %c0_i32_0 : i32, i32, i32
  }
}

</mosaic_0001>

<llo_original>
// kernel: tpu_custom_call.1
$region0: #{tpu_custom_call.1}
  #allocation0 [shape = 'u32[]', space=smem, size = 0x4, offset = 0x4, fixed_abs, tag = 'smem constant byte address 0x4 - core index']
  #allocation1 [shape = 'u32[144,128]{1,0:T(1,128)}', space=vmem, size = 0x12000, scoped, tag = 'internal scratch']
  %s0 = inlined_call_operand.hbm [shape: bf16[2,56,128], index: 0, kind: input, shape index: {}]
  %s1 = inlined_call_operand.hbm [shape: bf16[128,128], index: 1, kind: input, shape index: {}]
  %s2 = inlined_call_operand.vmem [shape: f32[1,128], index: 2, kind: input, shape index: {}]
  %s3 = inlined_call_operand.hbm [shape: f32[2,56,128], index: 3, kind: output, shape index: {0}]
  %s4 = inlined_call_operand.hbm [shape: f32[2,1,128], index: 4, kind: output, shape index: {1}]
  %5 = xla_tuple %s3, %s4
  %s6 = sld [smem:[#allocation0]]
  $region61: #{tpu_custom_call.1} parent=0
    _
  %s8 = ssub.s32 1, %s6
  %s9 = scalar_select 0, %s8, %s6
  $region1: #{tpu_custom_call.1} parent=0
    #allocation2 [shape = 'u8[28672]{0}', space=vmem, size = 0x7000, scoped, tag = 'input window, operand 0']
    #allocation3 [shape = 's32[2]{0}', space=sflag, size = 0x8, scoped, tag = 'scoped memory for tpu_custom_call.1']
    #allocation4 [shape = 's32[2]{0}', space=sflag, size = 0x8, scoped, tag = 'scoped memory for tpu_custom_call.1']
    #allocation5 [shape = 'u8[32768]{0}', space=vmem, size = 0x8000, scoped, tag = 'input window, operand 1, single buffered']
    #allocation6 [shape = 's32[1]{0}', space=sflag, size = 0x4, scoped, tag = 'scoped memory for tpu_custom_call.1']
    #allocation7 [shape = 'u8[57344]{0}', space=vmem, size = 0xe000, scoped, tag = 'output window, operand 0']
    #allocation8 [shape = 'u8[1024]{0}', space=vmem, size = 0x400, scoped, tag = 'output window, operand 1']
    #allocation9 [shape = 's32[2]{0}', space=sflag, size = 0x8, scoped, tag = 'scoped memory for tpu_custom_call.1']
    %10 = vsyncpa [#allocation3], 0
    %s11 = scalar_lea.sflag [#allocation3], 1
    %12 = vsyncpa %s11, 0
    %13 = vsyncpa [#allocation6], 0
    %14 = vsyncpa [#allocation4], 0
    %s15 = scalar_lea.sflag [#allocation4], 1
    %16 = vsyncpa %s15, 0
    %17 = vsyncpa [#allocation9], 0
    %s18 = scalar_lea.sflag [#allocation9], 1
    %19 = vsyncpa %s18, 0
    loop: start=0, step=1, limit=4
    $region2: #{tpu_custom_call.1} parent=1 // loop_pre_header
      _
    $region3: #{tpu_custom_call.1} parent=1 // loop_header
      %s21 = sphi 0, %s25
      %p22 = scmp.ge.s32.totalorder %s21, 4
      %s31 = sphi 0, %s33
      %s34 = sphi 0, %s31
      %s35 = sphi 0, %s34
      %s51 = sphi 0, %s35
      %s55 = sphi 0, %s55
      %s57 = sphi 0, %s55
      %s58 = sphi 0, %s57
      %s72 = sphi 0, %s58
      %s76 = sphi 0, %s76
      %s78 = sphi 0, %s76
      %s79 = sphi 0, %s78
      %s93 = sphi 0, %s79
      %s99 = sphi 0, %s101
      %s102 = sphi 0, %s99
      %s103 = sphi 0, %s102
      %s119 = sphi 0, %s103
      %s125 = sphi 0, %s127
      %s128 = sphi 0, %s125
      %s129 = sphi 0, %s128
      %s145 = sphi 0, %s129
    $region4: #{tpu_custom_call.1} parent=1 // loop_header_branch
      %24 = sbr.rel (%p22) target = $region8
    $region5: #{tpu_custom_call.1} parent=1 // loop_body
      %s26 = ssub.s32 %s21, 1
      %s27 = ssub.s32 %s21, 2
      %s28 = sadd.s32 %s21, 1
      %s29 = ssub.s32 %s21, %s28
      %p30 = scmp.eq.s32.totalorder %s29, 0
      %s32 = sadd.s32 %s31, 1
      %s33 = scalar_select %p30, %s31, %s32
      %p36 = pneg %p30
      %p37 = scmp.eq.s32.totalorder %s21, 1
      %p38 = por %p36, %p37
      %p39 = scmp.ne.s32.totalorder %s31, %s34
      %p40 = scmp.eq.s32.totalorder %s21, 0
      %p41 = por %p39, %p40
      %p42 = scmp.ne.s32.totalorder %s31, %s34
      %p43 = scmp.eq.s32.totalorder %s26, 1
      %p44 = por %p42, %p43
      %p45 = scmp.ne.s32.totalorder %s34, %s35
      %p46 = scmp.eq.s32.totalorder %s26, 0
      %p47 = por %p45, %p46
      %p48 = scmp.ne.s32.totalorder %s34, %s35
      %p49 = scmp.eq.s32.totalorder %s27, 1
      %p50 = por %p48, %p49
      %p52 = scmp.ne.s32.totalorder %s35, %s51
      %p53 = scmp.eq.s32.totalorder %s27, 0
      %p54 = por %p52, %p53
      %s56 = sadd.s32 %s55, 1
      %p59 = scmp.eq.s32.totalorder %s21, 1
      %p60 = scmp.ne.s32.totalorder %s55, %s57
      %p61 = scmp.eq.s32.totalorder %s21, 0
      %p62 = por %p60, %p61
      %p63 = scmp.ne.s32.totalorder %s55, %s57
      %p64 = scmp.eq.s32.totalorder %s26, 1
      %p65 = por %p63, %p64
      %p66 = scmp.ne.s32.totalorder %s57, %s58
      %p67 = scmp.eq.s32.totalorder %s26, 0
      %p68 = por %p66, %p67
      %p69 = scmp.ne.s32.totalorder %s57, %s58
      %p70 = scmp.eq.s32.totalorder %s27, 1
      %p71 = por %p69, %p70
      %p73 = scmp.ne.s32.totalorder %s58, %s72
      %p74 = scmp.eq.s32.totalorder %s27, 0
      %p75 = por %p73, %p74
      %s77 = sadd.s32 %s76, 1
      %p80 = scmp.eq.s32.totalorder %s21, 1
      %p81 = scmp.ne.s32.totalorder %s76, %s78
      %p82 = scmp.eq.s32.totalorder %s21, 0
      %p83 = por %p81, %p82
      %p84 = scmp.ne.s32.totalorder %s76, %s78
      %p85 = scmp.eq.s32.totalorder %s26, 1
      %p86 = por %p84, %p85
      %p87 = scmp.ne.s32.totalorder %s78, %s79
      %p88 = scmp.eq.s32.totalorder %s26, 0
      %p89 = por %p87, %p88
      %p90 = scmp.ne.s32.totalorder %s78, %s79
      %p91 = scmp.eq.s32.totalorder %s27, 1
      %p92 = por %p90, %p91
      %p94 = scmp.ne.s32.totalorder %s79, %s93
      %p95 = scmp.eq.s32.totalorder %s27, 0
      %p96 = por %p94, %p95
      %s97 = ssub.s32 %s21, %s28
      %p98 = scmp.eq.s32.totalorder %s97, 0
      %s100 = sadd.s32 %s99, 1
      %s101 = scalar_select %p98, %s99, %s100
      %p104 = pneg %p98
      %p105 = scmp.eq.s32.totalorder %s21, 1
      %p106 = por %p104, %p105
      %p107 = scmp.ne.s32.totalorder %s99, %s102
      %p108 = scmp.eq.s32.totalorder %s21, 0
      %p109 = por %p107, %p108
      %p110 = scmp.ne.s32.totalorder %s99, %s102
      %p111 = scmp.eq.s32.totalorder %s26, 1
      %p112 = por %p110, %p111
      %p113 = scmp.ne.s32.totalorder %s102, %s103
      %p114 = scmp.eq.s32.totalorder %s26, 0
      %p115 = por %p113, %p114
      %p116 = scmp.ne.s32.totalorder %s102, %s103
      %p117 = scmp.eq.s32.totalorder %s27, 1
      %p118 = por %p116, %p117
      %p120 = scmp.ne.s32.totalorder %s103, %s119
      %p121 = scmp.eq.s32.totalorder %s27, 0
      %p122 = por %p120, %p121
      %s123 = ssub.s32 %s21, %s28
      %p124 = scmp.eq.s32.totalorder %s123, 0
      %s126 = sadd.s32 %s125, 1
      %s127 = scalar_select %p124, %s125, %s126
      %p130 = pneg %p124
      %p131 = scmp.eq.s32.totalorder %s21, 1
      %p132 = por %p130, %p131
      %p133 = scmp.ne.s32.totalorder %s125, %s128
      %p134 = scmp.eq.s32.totalorder %s21, 0
      %p135 = por %p133, %p134
      %p136 = scmp.ne.s32.totalorder %s125, %s128
      %p137 = scmp.eq.s32.totalorder %s26, 1
      %p138 = por %p136, %p137
      %p139 = scmp.ne.s32.totalorder %s128, %s129
      %p140 = scmp.eq.s32.totalorder %s26, 0
      %p141 = por %p139, %p140
      %p142 = scmp.ne.s32.totalorder %s128, %s129
      %p143 = scmp.eq.s32.totalorder %s27, 1
      %p144 = por %p142, %p143
      %p146 = scmp.ne.s32.totalorder %s129, %s145
      %p147 = scmp.eq.s32.totalorder %s27, 0
      %p148 = por %p146, %p147
      %p149 = scmp.le.s32.totalorder 1, %s21
      %p150 = scmp.lt.s32.totalorder %s21, 3
      %p151 = pnand %p149, %p150
      %p152 = pneg %p151
      // Predicated region
      $region9: #{tpu_custom_call.1} parent=5 // pred_check
        _
      $region10: #{tpu_custom_call.1} parent=5 // pred_check_branch
        %154 = sbr.rel (%p151) target = $region12
      $region11: #{tpu_custom_call.1} parent=5 // pred_region
        %s155 = ssub.s32 %s21, 1
        // Predicated region
        $region13: #{tpu_custom_call.1} parent=11 // pred_check
          %p156 = pneg %p68
        $region14: #{tpu_custom_call.1} parent=11 // pred_check_branch
          %158 = sbr.rel (%p156) target = $region16
        $region15: #{tpu_custom_call.1} parent=11 // pred_region
          %s160 = ssub.s32 1024, 1024
          %161 = vsyncadd [#allocation6], %s160
          %s162 = sshll.u32 [#allocation5], 4
          %s163 = int_to_ptr.vmem [resolvable:$true] %s162
          %168 = dma.hbm_to_vmem [thread:$0]  %s1, 1024, %s163, [#allocation6], 64, 64, 4
        $region16: #{tpu_custom_call.1} parent=11 // pred_fallthru
          _
        // Predicated region
        $region17: #{tpu_custom_call.1} parent=11 // pred_check
          %p169 = pneg %p89
        $region18: #{tpu_custom_call.1} parent=11 // pred_check_branch
          %171 = sbr.rel (%p169) target = $region20
        $region19: #{tpu_custom_call.1} parent=11 // pred_region
          _
        $region20: #{tpu_custom_call.1} parent=11 // pred_fallthru
          _
      $region12: #{tpu_custom_call.1} parent=5 // pred_fallthru
        _
      %p172 = scmp.lt.s32.totalorder %s21, 2
      // Predicated region
      $region21: #{tpu_custom_call.1} parent=5 // pred_check
        %p173 = pneg %p172
      $region22: #{tpu_custom_call.1} parent=5 // pred_check_branch
        %175 = sbr.rel (%p173) target = $region24
      $region23: #{tpu_custom_call.1} parent=5 // pred_region
        // Predicated region
        $region25: #{tpu_custom_call.1} parent=23 // pred_check
          %p176 = pneg %p41
        $region26: #{tpu_custom_call.1} parent=23 // pred_check_branch
          %178 = sbr.rel (%p176) target = $region28
        $region27: #{tpu_custom_call.1} parent=23 // pred_region
          %s179 = sand.u32 %s31, 1
          %s180 = scalar_lea.sflag [#allocation3], %s179
          %s181 = sand.u32 %s31, 1
          %s182 = smul.addr %s181, 28
          %s183 = scalar_lea.vmem [#allocation2], %s182
          %s185 = ssub.s32 448, 448
          %186 = vsyncadd %s180, %s185
          %s187 = smul.addr %s21, 7
          %s188 = smul.addr %s187, 64
          %s189 = scalar_lea.hbm %s0, %s188
          %s190 = sshll.u32 %s183, 4
          %s191 = int_to_ptr.vmem [resolvable:$true] %s190
          %196 = dma.hbm_to_vmem [thread:$0]  %s189, 448, %s191, %s180, 64, 64, 4
        $region28: #{tpu_custom_call.1} parent=23 // pred_fallthru
          _
      $region24: #{tpu_custom_call.1} parent=5 // pred_fallthru
        _
      %p197 = scmp.le.s32.totalorder 1, %s21
      %p198 = scmp.lt.s32.totalorder %s21, 3
      %p199 = pnand %p197, %p198
      %p200 = pneg %p199
      // Predicated region
      $region29: #{tpu_custom_call.1} parent=5 // pred_check
        _
      $region30: #{tpu_custom_call.1} parent=5 // pred_check_branch
        %202 = sbr.rel (%p199) target = $region32
      $region31: #{tpu_custom_call.1} parent=5 // pred_region
        %s203 = ssub.s32 %s21, 1
        %s204 = sand.u32 %s34, 1
        %s205 = scalar_lea.sflag [#allocation3], %s204
        %s206 = sand.u32 %s34, 1
        %s207 = smul.addr %s206, 28
        %s208 = scalar_lea.vmem [#allocation2], %s207
        // Predicated region
        $region33: #{tpu_custom_call.1} parent=31 // pred_check
          %p209 = pneg %p47
        $region34: #{tpu_custom_call.1} parent=31 // pred_check_branch
          %211 = sbr.rel (%p209) target = $region36
        $region35: #{tpu_custom_call.1} parent=31 // pred_region
          %212 = dma.done %s205, 448
        $region36: #{tpu_custom_call.1} parent=31 // pred_fallthru
          _
        // Predicated region
        $region37: #{tpu_custom_call.1} parent=31 // pred_check
          %p213 = pneg %p68
        $region38: #{tpu_custom_call.1} parent=31 // pred_check_branch
          %215 = sbr.rel (%p213) target = $region40
        $region39: #{tpu_custom_call.1} parent=31 // pred_region
          %216 = dma.done [#allocation6], 1024
        $region40: #{tpu_custom_call.1} parent=31 // pred_fallthru
          _
        %s217 = sand.u32 %s34, 1
        %s218 = scalar_lea.sflag [#allocation3], %s217
        %s219 = sand.u32 %s34, 1
        %s220 = smul.addr %s219, 28
        %s221 = scalar_lea.vmem [#allocation2], %s220
        %p222 = pneg %p47
        %p223 = pneg %p44
        %p224 = pneg %p68
        %p225 = pneg %p65
        %p226 = pneg %p89
        %p227 = pneg %p86
        %p228 = pneg %p115
        %p229 = pneg %p112
        %s230 = sand.u32 %s102, 1
        %s231 = scalar_lea.sflag [#allocation4], %s230
        %s232 = sand.u32 %s102, 1
        %s233 = smul.addr %s232, 56
        %s234 = scalar_lea.vmem [#allocation7], %s233
        %p235 = pneg %p141
        %p236 = pneg %p138
        %s237 = sand.u32 %s128, 1
        %s238 = scalar_lea.sflag [#allocation9], %s237
        %s239 = sand.u32 %s128, 1
        %s240 = scalar_lea.vmem [#allocation8], %s239
        %v242 = vld [vmem:[%s208] sm:$0xf]
        %v243 = vld [vmem:[%s208 + $0x4] sm:$0xf]
        %v244 = vld [vmem:[%s208 + $0x8] sm:$0xf]
        %v245 = vld [vmem:[%s208 + $0xc] sm:$0xf]
        %v246 = vld [vmem:[%s208 + $0x10] sm:$0xf]
        %v247 = vld [vmem:[%s208 + $0x14] sm:$0xf]
        %v248 = vld [vmem:[%s208 + $0x18] sm:$0xf]
        %v249 = vld [vmem:[#allocation5] sm:$0xf]
        %v250 = vld [vmem:[#allocation5 + $0x4] sm:$0xf]
        %v251 = vld [vmem:[#allocation5 + $0x8] sm:$0xf]
        %v252 = vld [vmem:[#allocation5 + $0xc] sm:$0xf]
        %v253 = vld [vmem:[#allocation5 + $0x10] sm:$0xf]
        %v254 = vld [vmem:[#allocation5 + $0x14] sm:$0xf]
        %v255 = vld [vmem:[#allocation5 + $0x18] sm:$0xf]
        %v256 = vld [vmem:[#allocation5 + $0x1c] sm:$0xf]
        %v257 = vld [vmem:[#allocation5 + $0x20] sm:$0xf]
        %v258 = vld [vmem:[#allocation5 + $0x24] sm:$0xf]
        %v259 = vld [vmem:[#allocation5 + $0x28] sm:$0xf]
        %v260 = vld [vmem:[#allocation5 + $0x2c] sm:$0xf]
        %v261 = vld [vmem:[#allocation5 + $0x30] sm:$0xf]
        %v262 = vld [vmem:[#allocation5 + $0x34] sm:$0xf]
        %v263 = vld [vmem:[#allocation5 + $0x38] sm:$0xf]
        %v264 = vld [vmem:[#allocation5 + $0x3c] sm:$0xf]
        %v265 = vld [vmem:[%s2] sm:$0x1]
        %v267 = vlaneseq
        %v268 = vshrl.u32 %v267, 7
        %v269 = vsub.s32 0, %v268
        %v270 = vrot.slane %v265, %v269
        %v279 = vunpack.c.l.b16 %v242
        %v280 = vunpack.c.l.b16 %v243
        %v281 = vunpack.c.l.b16 %v244
        %v282 = vunpack.c.l.b16 %v245
        %v283 = vunpack.c.l.b16 %v246
        %v284 = vunpack.c.l.b16 %v247
        %v285 = vunpack.c.l.b16 %v248
        %v286 = vpack.c.b16 %v280, %v279
        %v287 = vpack.c.b16 %v282, %v281
        %v288 = vpack.c.b16 %v284, %v283
        %v289 = vpack.c.b16 %v285, %v285
        %v310 = vunpack.c.l.b16 %v249
        %v311 = vunpack.c.l.b16 %v250
        %v312 = vunpack.c.l.b16 %v251
        %v313 = vunpack.c.l.b16 %v252
        %v314 = vunpack.c.l.b16 %v253
        %v315 = vunpack.c.l.b16 %v254
        %v316 = vunpack.c.l.b16 %v255
        %v317 = vunpack.c.l.b16 %v256
        %v318 = vunpack.c.l.b16 %v257
        %v319 = vunpack.c.l.b16 %v258
        %v320 = vunpack.c.l.b16 %v259
        %v321 = vunpack.c.l.b16 %v260
        %v322 = vunpack.c.l.b16 %v261
        %v323 = vunpack.c.l.b16 %v262
        %v324 = vunpack.c.l.b16 %v263
        %v325 = vunpack.c.l.b16 %v264
        %v326 = vpack.c.b16 %v311, %v310
        %v327 = vpack.c.b16 %v313, %v312
        %v328 = vpack.c.b16 %v315, %v314
        %v329 = vpack.c.b16 %v317, %v316
        %v330 = vpack.c.b16 %v319, %v318
        %v331 = vpack.c.b16 %v321, %v320
        %v332 = vpack.c.b16 %v323, %v322
        %v333 = vpack.c.b16 %v325, %v324
        %342 = vmatprep.subr.bf16.mxu0 0
        %343 = vmatpush1.bf16.msra.mxu0 %v326
        %344 = vmatprep.subr.bf16.mxu0 0
        %345 = vmatpush1.bf16.msra.mxu0 %v327
        %346 = vmatprep.subr.bf16.mxu0 0
        %347 = vmatpush1.bf16.msra.mxu0 %v328
        %348 = vmatprep.subr.bf16.mxu0 0
        %349 = vmatpush1.bf16.msra.mxu0 %v329
        %350 = vmatprep.subr.bf16.mxu0 0
        %351 = vmatpush1.bf16.msra.mxu0 %v330
        %352 = vmatprep.subr.bf16.mxu0 0
        %353 = vmatpush1.bf16.msra.mxu0 %v331
        %354 = vmatprep.subr.bf16.mxu0 0
        %355 = vmatpush1.bf16.msra.mxu0 %v332
        %356 = vmatprep.subr.bf16.mxu0 0
        %357 = vmatpush1.bf16.msra.mxu0 %v333
        %358 = vmatprep.subr.bf16.mxu0 0
        %359 = vmatpush1.bf16.msra.mxu0 0
        %360 = vmatprep.subr.bf16.mxu0 0
        %361 = vmatpush1.bf16.msra.mxu0 0
        %362 = vmatprep.subr.bf16.mxu0 0
        %363 = vmatpush1.bf16.msra.mxu0 0
        %364 = vmatprep.subr.bf16.mxu0 0
        %365 = vmatpush1.bf16.msra.mxu0 0
        %366 = vmatprep.subr.bf16.mxu0 0
        %367 = vmatpush1.bf16.msra.mxu0 0
        %368 = vmatprep.subr.bf16.mxu0 0
        %369 = vmatpush1.bf16.msra.mxu0 0
        %370 = vmatprep.subr.bf16.mxu0 0
        %371 = vmatpush1.bf16.msra.mxu0 0
        %372 = vmatprep.subr.bf16.mxu0 0
        %373 = vmatpush1.bf16.msra.mxu0 0
        %374 = vmatprep.mubr.bf16.mxu0 0
        %375 = vmatmul.mubr.bf16.gmra.mrb[0].mxu0 %v286
        %v376 = vpop.f32.mrb[0].mxu0
        %v377 = vadd.f32 %v270, %v376
        %v378 = vpop.f32.mrb[0].mxu0
        %v379 = vpop.f32.mrb[0].mxu0
        %v380 = vadd.f32 %v270, %v379
        %v381 = vpop.f32.mrb[0].mxu0
        %382 = vmatprep.mubr.bf16.mxu0 0
        %383 = vmatmul.mubr.bf16.gmra.mrb[0].mxu0 %v287
        %v384 = vpop.f32.mrb[0].mxu0
        %v385 = vadd.f32 %v270, %v384
        %v386 = vpop.f32.mrb[0].mxu0
        %v387 = vpop.f32.mrb[0].mxu0
        %v388 = vadd.f32 %v270, %v387
        %v389 = vpop.f32.mrb[0].mxu0
        %390 = vmatprep.mubr.bf16.mxu0 0
        %391 = vmatmul.mubr.bf16.gmra.mrb[0].mxu0 %v288
        %v392 = vpop.f32.mrb[0].mxu0
        %v393 = vadd.f32 %v270, %v392
        %v394 = vpop.f32.mrb[0].mxu0
        %v395 = vpop.f32.mrb[0].mxu0
        %v396 = vadd.f32 %v270, %v395
        %v397 = vpop.f32.mrb[0].mxu0
        %398 = vmatprep.mubr.bf16.mxu0 0
        %399 = vmatmul.mubr.bf16.gmra.mrb[0].mxu0 %v289
        %v400 = vpop.f32.mrb[0].mxu0
        %v401 = vadd.f32 %v270, %v400
        %v402 = vpop.f32.mrb[0].mxu0
        %v403 = vpop.f32.mrb[0].mxu0
        %v404 = vpop.f32.mrb[0].mxu0
        %405 = vdwg.mxu0
        %v406 = vmax.f32 %v377, 0.0
        %v407 = vmax.f32 %v380, 0.0
        %v408 = vmax.f32 %v385, 0.0
        %v409 = vmax.f32 %v388, 0.0
        %v410 = vmax.f32 %v393, 0.0
        %v411 = vmax.f32 %v396, 0.0
        %v412 = vmax.f32 %v401, 0.0
        %413 = vst [vmem:[%s234] sm:$0xff] %v406
        %414 = vst [vmem:[%s234 + $0x8] sm:$0xff] %v407
        %415 = vst [vmem:[%s234 + $0x10] sm:$0xff] %v408
        %416 = vst [vmem:[%s234 + $0x18] sm:$0xff] %v409
        %417 = vst [vmem:[%s234 + $0x20] sm:$0xff] %v410
        %418 = vst [vmem:[%s234 + $0x28] sm:$0xff] %v411
        %419 = vst [vmem:[%s234 + $0x30] sm:$0xff] %v412
        %v420 = vadd.f32 %v406, %v407
        %v421 = vadd.f32 %v420, %v408
        %v422 = vadd.f32 %v421, %v409
        %v423 = vadd.f32 %v422, %v410
        %v424 = vadd.f32 %v423, %v411
        %v425 = vadd.f32 %v424, %v412
        %v426 = vrot.slane %v425, 4
        %v427 = vadd.f32 %v425, %v426
        %v428 = vrot.slane %v427, 2
        %v429 = vadd.f32 %v427, %v428
        %v430 = vrot.slane %v429, 1
        %v431 = vadd.f32 %v429, %v430
        %v432 = vmax.f32 %v265, 0.0
        %v433 = vmul.f32 %v432, 7.0
        %v434 = vsub.f32 %v431, %v433
        %v435 = vmul.f32 %v434, 0.020408163
        %436 = vst [vmem:[%s240] sm:$0x1] %v435
        %s437 = sand.u32 %s102, 1
        %s438 = scalar_lea.sflag [#allocation4], %s437
        %s439 = sand.u32 %s102, 1
        %s440 = smul.addr %s439, 56
        %s441 = scalar_lea.vmem [#allocation7], %s440
        %s442 = sand.u32 %s128, 1
        %s443 = scalar_lea.sflag [#allocation9], %s442
        %s444 = sand.u32 %s128, 1
        %s445 = scalar_lea.vmem [#allocation8], %s444
        // Predicated region
        $region41: #{tpu_custom_call.1} parent=31 // pred_check
          %p446 = pneg %p112
        $region42: #{tpu_custom_call.1} parent=31 // pred_check_branch
          %448 = sbr.rel (%p446) target = $region44
        $region43: #{tpu_custom_call.1} parent=31 // pred_region
          %s450 = ssub.s32 896, 896
          %451 = vsyncadd %s438, %s450
          %s452 = smul.addr %s26, 7
          %s453 = smul.addr %s452, 128
          %s454 = scalar_lea.hbm %s3, %s453
          %s455 = sshll.u32 %s441, 4
          %s456 = int_to_ptr.vmem [resolvable:$true] %s455
          %461 = dma.vmem_to_hbm [thread:$0]  %s456, 896, %s454, %s438, 128, 128, 8
        $region44: #{tpu_custom_call.1} parent=31 // pred_fallthru
          _
        // Predicated region
        $region45: #{tpu_custom_call.1} parent=31 // pred_check
          %p462 = pneg %p138
        $region46: #{tpu_custom_call.1} parent=31 // pred_check_branch
          %464 = sbr.rel (%p462) target = $region48
        $region47: #{tpu_custom_call.1} parent=31 // pred_region
          %s466 = ssub.s32 16, 16
          %467 = vsyncadd %s443, %s466
          %s468 = smul.addr %s26, 16
          %s469 = scalar_lea.hbm %s4, %s468
          %s471 = sshll.u32 %s445, 4
          %s472 = int_to_ptr.vmem [resolvable:$true] %s471
          %474 = dma.vmem_to_hbm [thread:$0]  %s472, 16, %s469, %s443
        $region48: #{tpu_custom_call.1} parent=31 // pred_fallthru
          _
      $region32: #{tpu_custom_call.1} parent=5 // pred_fallthru
        _
      %p475 = scmp.le.s32.totalorder 2, %s21
      // Predicated region
      $region49: #{tpu_custom_call.1} parent=5 // pred_check
        %p476 = pneg %p475
      $region50: #{tpu_custom_call.1} parent=5 // pred_check_branch
        %478 = sbr.rel (%p476) target = $region52
      $region51: #{tpu_custom_call.1} parent=5 // pred_region
        %s479 = ssub.s32 %s21, 2
        // Predicated region
        $region53: #{tpu_custom_call.1} parent=51 // pred_check
          %p480 = pneg %p118
        $region54: #{tpu_custom_call.1} parent=51 // pred_check_branch
          %482 = sbr.rel (%p480) target = $region56
        $region55: #{tpu_custom_call.1} parent=51 // pred_region
          %s483 = sand.u32 %s103, 1
          %s484 = scalar_lea.sflag [#allocation4], %s483
          %s485 = sand.u32 %s103, 1
          %s486 = smul.addr %s485, 56
          %s487 = scalar_lea.vmem [#allocation7], %s486
          %488 = dma.done %s484, 896
        $region56: #{tpu_custom_call.1} parent=51 // pred_fallthru
          _
        // Predicated region
        $region57: #{tpu_custom_call.1} parent=51 // pred_check
          %p489 = pneg %p144
        $region58: #{tpu_custom_call.1} parent=51 // pred_check_branch
          %491 = sbr.rel (%p489) target = $region60
        $region59: #{tpu_custom_call.1} parent=51 // pred_region
          %s492 = sand.u32 %s129, 1
          %s493 = scalar_lea.sflag [#allocation9], %s492
          %s494 = sand.u32 %s129, 1
          %s495 = scalar_lea.vmem [#allocation8], %s494
          %496 = dma.done %s493, 16
        $region60: #{tpu_custom_call.1} parent=51 // pred_fallthru
          _
      $region52: #{tpu_custom_call.1} parent=5 // pred_fallthru
        _
    $region6: #{tpu_custom_call.1} parent=1 // loop_footer
      %s25 = sadd.s32 1, %s21
    $region7: #{tpu_custom_call.1} parent=1 // loop_footer_branch
      %20 = sbr.rel target = $region3
    $region8: #{tpu_custom_call.1} parent=1 // loop_exit
      _
    %497 = vsyncpa [#allocation3], 1
    %s498 = scalar_lea.sflag [#allocation3], 1
    %499 = vsyncpa %s498, 1
    %500 = vsyncpa [#allocation6], 1
    %501 = vsyncpa [#allocation4], 1
    %s502 = scalar_lea.sflag [#allocation4], 1
    %503 = vsyncpa %s502, 1
    %504 = vsyncpa [#allocation9], 1
    %s505 = scalar_lea.sflag [#allocation9], 1
    %506 = vsyncpa %s505, 1

</llo_original>
